<compile_context>
chip_gen: v5e
topology: v5e:2x2
jax: 0.10.0
libtpu: 0.0.40
codegen_flags: <defaults>
</compile_context>

<pallas_src>
import functools
import math
from types import SimpleNamespace

import jax
import jax.numpy as jnp
from jax.experimental import pallas as pl
from jax.experimental.pallas import tpu as pltpu

# ----------------------------------------------------------------------------
# Tiling targets.  tn/tk are multiples of 256 (fills the 256x256 MXU on
# v6e/v7x and is still a 128-multiple for v5e's 128-wide MXU).  Halve these on
# v7x if the per-step VMEM footprint gets tight (64 MiB physical VMEM there).
# ----------------------------------------------------------------------------
TM_TARGET = 256
TN_TARGET = 512
TK_TARGET = 512
TQ_TARGET = 256                      # attention query-block tile
VMEM_LIMIT_BYTES = 32 * 1024 * 1024  # >= default scoped VMEM on v5e/v6e/v7x


def _round_tile(dim, target):
    """Largest tile <= target that evenly divides `dim`."""
    if dim <= target:
        return dim
    best = 1
    for t in range(1, target + 1):
        if dim % t == 0:
            best = t
    return best


# ----------------------------------------------------------------------------
# Dense kernels (tiled matmul, bf16 operands, f32 accumulation)
# ----------------------------------------------------------------------------
def _dense_kernel(x_ref, w_ref, b_ref, o_ref, acc_ref, *, activation):
    k = pl.program_id(2)

    @pl.when(k == 0)
    def _init():
        acc_ref[...] = jnp.zeros_like(acc_ref)

    acc_ref[...] += jnp.dot(
        x_ref[...].astype(jnp.bfloat16),
        w_ref[...].astype(jnp.bfloat16),
        preferred_element_type=jnp.float32)

    @pl.when(k == pl.num_programs(2) - 1)
    def _finalize():
        y = acc_ref[...] + b_ref[...].astype(jnp.float32)
        if activation == "gelu":
            # TODO(synk): BERT reference uses exact erf-GELU; tanh approximation here.
            y = 0.5 * y * (1.0 + jnp.tanh(
                0.7978845608028654 * (y + 0.044715 * y * y * y)))
        o_ref[...] = y.astype(o_ref.dtype)


def _dense_ln_kernel(x_ref, w_ref, b_ref, r_ref, g_ref, bb_ref, o_ref, acc_ref,
                     *, eps):
    # Matmul with fused bias + residual-add + LayerNorm epilogue.  Residual,
    # gamma, beta block indices do not depend on k, so they stay VMEM-resident
    # across the K reduction (no redundant DMA).
    k = pl.program_id(2)

    @pl.when(k == 0)
    def _init():
        acc_ref[...] = jnp.zeros_like(acc_ref)

    acc_ref[...] += jnp.dot(
        x_ref[...].astype(jnp.bfloat16),
        w_ref[...].astype(jnp.bfloat16),
        preferred_element_type=jnp.float32)

    @pl.when(k == pl.num_programs(2) - 1)
    def _finalize():
        y = (acc_ref[...] + b_ref[...].astype(jnp.float32)
             + r_ref[...].astype(jnp.float32))
        mu = jnp.mean(y, axis=-1, keepdims=True)
        var = jnp.mean((y - mu) * (y - mu), axis=-1, keepdims=True)
        y = (y - mu) * jax.lax.rsqrt(var + eps)
        y = y * g_ref[...].astype(jnp.float32) + bb_ref[...].astype(jnp.float32)
        o_ref[...] = y.astype(o_ref.dtype)


def dense(x, w, b, *, activation=None, residual=None, ln_gamma=None,
          ln_beta=None, ln_eps=1e-12):
    """y = act(x @ w + b), optionally fused with residual-add + LayerNorm."""
    M, K = x.shape
    K2, N = w.shape
    assert K == K2
    fuse_ln = ln_gamma is not None

    tm = _round_tile(M, TM_TARGET)
    tk = _round_tile(K, TK_TARGET)
    # LayerNorm reduces over the whole output row, so the fused variant keeps
    # the full N in one tile (fine for BERT hidden sizes).
    tn = N if fuse_ln else _round_tile(N, TN_TARGET)

    grid = (M // tm, N // tn, K // tk)
    b2 = b.reshape(1, N)

    in_specs = [
        pl.BlockSpec((tm, tk), lambda i, j, k: (i, k)),
        pl.BlockSpec((tk, tn), lambda i, j, k: (k, j)),
        pl.BlockSpec((1, tn), lambda i, j, k: (0, j)),
    ]
    operands = [x, w, b2]
    if fuse_ln:
        kernel = functools.partial(_dense_ln_kernel, eps=ln_eps)
        in_specs += [
            pl.BlockSpec((tm, tn), lambda i, j, k: (i, j)),   # residual
            pl.BlockSpec((1, tn), lambda i, j, k: (0, j)),    # gamma
            pl.BlockSpec((1, tn), lambda i, j, k: (0, j)),    # beta
        ]
        operands += [residual, ln_gamma.reshape(1, N), ln_beta.reshape(1, N)]
    else:
        kernel = functools.partial(_dense_kernel, activation=activation)

    return pl.pallas_call(
        kernel,
        out_shape=jax.ShapeDtypeStruct((M, N), jnp.float32),
        grid=grid,
        in_specs=in_specs,
        out_specs=pl.BlockSpec((tm, tn), lambda i, j, k: (i, j)),
        scratch_shapes=[pltpu.VMEM((tm, tn), jnp.float32)],
        compiler_params=pltpu.CompilerParams(
            dimension_semantics=("parallel", "parallel", "arbitrary"),
            vmem_limit_bytes=VMEM_LIMIT_BYTES),
    )(*operands)


# ----------------------------------------------------------------------------
# Attention kernel: per (batch, query-block) grid step, all heads processed
# from the packed [B, S, 3H] QKV tensor (lane-dense loads/stores, no JAX-level
# transposes).
# ----------------------------------------------------------------------------
def _attention_kernel(q_ref, kv_ref, m_ref, ctx_ref, sc_ref, *,
                      scale, num_heads, head_dim):
    H = num_heads * head_dim
    mask = m_ref[0, 0].astype(jnp.float32)          # (1, S) additive mask

    for h in range(num_heads):                      # static, unrolled
        lo = h * head_dim
        q = q_ref[0, :, lo:lo + head_dim].astype(jnp.bfloat16)            # (tq, dh)
        k = kv_ref[0, :, H + lo:H + lo + head_dim].astype(jnp.bfloat16)   # (S, dh)
        v = kv_ref[0, :, 2 * H + lo:2 * H + lo + head_dim].astype(jnp.bfloat16)

        # Contract over head_dim directly (no explicit .T / XLU transpose).
        s = jax.lax.dot_general(
            q, k, (((1,), (1,)), ((), ())),
            preferred_element_type=jnp.float32) * scale + mask             # (tq, S)
        sc_ref[0, h] = s                              # pre-softmax logits (f32)

        mx = jnp.max(s, axis=-1, keepdims=True)
        e = jnp.exp(s - mx)
        p = e * pl.reciprocal(jnp.sum(e, axis=-1, keepdims=True), approx=True)
        ctx = jnp.dot(p.astype(jnp.bfloat16), v,
                      preferred_element_type=jnp.float32)                  # (tq, dh)
        ctx_ref[0, :, lo:lo + head_dim] = ctx.astype(ctx_ref.dtype)


def attention(qkv, attn_mask, num_heads, head_dim):
    """qkv: [B, S, 3H] packed (q|k|v).  Returns ctx [B, S, H], scores [B, nH, S, S]."""
    B, S, threeH = qkv.shape
    H = num_heads * head_dim
    assert threeH == 3 * H
    tq = _round_tile(S, TQ_TARGET)
    grid = (B, S // tq)

    kernel = functools.partial(
        _attention_kernel, scale=1.0 / math.sqrt(head_dim),
        num_heads=num_heads, head_dim=head_dim)

    ctx, scores = pl.pallas_call(
        kernel,
        out_shape=(jax.ShapeDtypeStruct((B, S, H), jnp.float32),
                   jax.ShapeDtypeStruct((B, num_heads, S, S), jnp.float32)),
        grid=grid,
        in_specs=[
            pl.BlockSpec((1, tq, threeH), lambda b, qi: (b, qi, 0)),   # query rows
            pl.BlockSpec((1, S, threeH), lambda b, qi: (b, 0, 0)),     # full K/V rows
            pl.BlockSpec((1, 1, 1, S), lambda b, qi: (b, 0, 0, 0)),    # additive mask
        ],
        out_specs=(
            pl.BlockSpec((1, tq, H), lambda b, qi: (b, qi, 0)),            # ctx
            pl.BlockSpec((1, num_heads, tq, S), lambda b, qi: (b, 0, qi, 0)),  # scores
        ),
        compiler_params=pltpu.CompilerParams(
            dimension_semantics=("parallel", "parallel"),
            vmem_limit_bytes=VMEM_LIMIT_BYTES),
    )(qkv, qkv, attn_mask)
    return ctx, scores


# ----------------------------------------------------------------------------
# Parameter init (deterministic, BERT-style scale 0.02)
# ----------------------------------------------------------------------------
def init_layer_params(key, hidden, intermediate):
    keys = jax.random.split(key, 4)
    std = 0.02

    def lin(k, in_d, out_d):
        return (jax.random.normal(k, (in_d, out_d), jnp.float32) * std,
                jnp.zeros((out_d,), jnp.float32))

    p = {}
    p["qkv_w"], p["qkv_b"] = lin(keys[0], hidden, 3 * hidden)   # fused Q|K|V
    p["ao_w"], p["ao_b"] = lin(keys[1], hidden, hidden)
    p["ln1_g"] = jnp.ones((hidden,), jnp.float32)
    p["ln1_b"] = jnp.zeros((hidden,), jnp.float32)
    p["i_w"], p["i_b"] = lin(keys[2], hidden, intermediate)
    p["o_w"], p["o_b"] = lin(keys[3], intermediate, hidden)
    p["ln2_g"] = jnp.ones((hidden,), jnp.float32)
    p["ln2_b"] = jnp.zeros((hidden,), jnp.float32)
    return p


# ----------------------------------------------------------------------------
# Layer / Encoder forward
# ----------------------------------------------------------------------------
def layer_forward(params, hidden_states, attention_mask, num_heads):
    B, S, H = hidden_states.shape
    dh = H // num_heads
    x2d = hidden_states.reshape(B * S, H)

    # Fused Q/K/V projection: one MXU kernel, x read from HBM once.
    qkv = dense(x2d, params["qkv_w"], params["qkv_b"])        # (B*S, 3H)
    qkv3 = qkv.reshape(B, S, 3 * H)                           # metadata-only reshape

    # TODO(synk): attention_scores returned are pre-softmax logits
    # (scale*QK^T + mask), matching the previous implementation.
    ctx, attention_scores = attention(qkv3, attention_mask, num_heads, dh)
    ctx2d = ctx.reshape(B * S, H)                             # metadata-only reshape

    # attention output projection + residual + LayerNorm (fused)
    h1 = dense(ctx2d, params["ao_w"], params["ao_b"],
               residual=x2d, ln_gamma=params["ln1_g"], ln_beta=params["ln1_b"])

    # intermediate dense + GELU (fused)
    inter = dense(h1, params["i_w"], params["i_b"], activation="gelu")

    # FFN output projection + residual + LayerNorm (fused)
    h2 = dense(inter, params["o_w"], params["o_b"],
               residual=h1, ln_gamma=params["ln2_g"], ln_beta=params["ln2_b"])

    return h2.reshape(B, S, H), attention_scores


def encoder_forward(layer_params_list, hidden_states, attention_mask,
                    num_heads, output_all_encoded_layers=True):
    all_encoder_layers = []
    attention_scores = None
    for params in layer_params_list:
        hidden_states, attention_scores = layer_forward(
            params, hidden_states, attention_mask, num_heads)
        if output_all_encoded_layers:
            all_encoder_layers.append([hidden_states, attention_scores])
    if not output_all_encoded_layers:
        all_encoder_layers.append([hidden_states, attention_scores])
    return all_encoder_layers


# ----------------------------------------------------------------------------
# Main
# ----------------------------------------------------------------------------
if __name__ == "__main__":
    args = SimpleNamespace(
        hidden_size=32,
        num_attention_heads=4,
        intermediate_size=64,
        num_hidden_layers=2,
    )

    B, S, H = 2, 8, args.hidden_size

    key = jax.random.PRNGKey(0)
    k_in, k_params = jax.random.split(key)

    hidden_states = jax.random.normal(k_in, (B, S, H), jnp.float32)

    # BERT-style extended additive attention mask: [B, 1, 1, S], 0 for keep,
    # -10000 for masked positions (mask the last 2 tokens of batch 1).
    mask = jnp.zeros((B, 1, 1, S), jnp.float32)
    mask = mask.at[1, :, :, -2:].set(-10000.0)

    # Mirror `copy.deepcopy(layer)` in the reference Encoder: every layer
    # starts from the same parameters.
    params = init_layer_params(k_params, args.hidden_size, args.intermediate_size)
    layer_params_list = [params for _ in range(args.num_hidden_layers)]

    outputs = encoder_forward(layer_params_list, hidden_states, mask,
                              args.num_attention_heads,
                              output_all_encoded_layers=True)

    for hs, sc in outputs:
        jax.block_until_ready(hs)
        jax.block_until_ready(sc)
        assert hs.shape == (B, S, H)
        assert sc.shape == (B, args.num_attention_heads, S, S)

    print("KERNEL_OK")
</pallas_src>

<mosaic_0001>
module attributes {stable_mosaic.version = 11 : i64} {
  func.func @_dense_kernel(%arg0: i32, %arg1: i32, %arg2: i32, %arg3: memref<16x32xf32, #tpu.memory_space<vmem>>, %arg4: memref<32x96xf32, #tpu.memory_space<vmem>>, %arg5: memref<1x96xf32, #tpu.memory_space<vmem>>, %arg6: memref<16x96xf32, #tpu.memory_space<vmem>>, %arg7: memref<16x96xf32, #tpu.memory_space<vmem>>) attributes {dimension_semantics = [#tpu.dimension_semantics<parallel>, #tpu.dimension_semantics<parallel>, #tpu.dimension_semantics<arbitrary>], iteration_bounds = array<i64: 1, 1, 1>, scalar_prefetch = 0 : i64, scratch_operands = 1 : i64, tpu.core_type = #tpu.core_type<tc>, window_params = [{transform_indices = @transform_0, window_bounds = array<i64: 16, 32>}, {transform_indices = @transform_1, window_bounds = array<i64: 32, 96>}, {transform_indices = @transform_2, window_bounds = array<i64: 1, 96>}, {transform_indices = @transform_3, window_bounds = array<i64: 16, 96>}]} {
    %c0_i32 = arith.constant 0 : i32
    %0 = arith.cmpi eq, %arg2, %c0_i32 : i32
    %1 = arith.extui %0 : i1 to i32
    %c0_i32_0 = arith.constant 0 : i32
    %2 = arith.cmpi ne, %1, %c0_i32_0 : i32
    scf.if %2 {
      %cst_10 = arith.constant 0.000000e+00 : f32
      %14 = vector.broadcast %cst_10 : f32 to vector<16x96xf32>
      %c0_11 = arith.constant 0 : index
      %c0_12 = arith.constant 0 : index
      %15 = vector.load %arg7[%c0_11, %c0_12] : memref<16x96xf32, #tpu.memory_space<vmem>>, vector<16x96xf32>
      tpu.vector_store %arg7[%c0_11, %c0_12], %14 {strides = array<i32>} : memref<16x96xf32, #tpu.memory_space<vmem>>, vector<16x96xf32>,
    } else {
    }
    %c0 = arith.constant 0 : index
    %c0_1 = arith.constant 0 : index
    %3 = vector.load %arg7[%c0, %c0_1] : memref<16x96xf32, #tpu.memory_space<vmem>>, vector<16x96xf32>
    %c0_2 = arith.constant 0 : index
    %c0_3 = arith.constant 0 : index
    %4 = vector.load %arg3[%c0_2, %c0_3] : memref<16x32xf32, #tpu.memory_space<vmem>>, vector<16x32xf32>
    %5 = arith.truncf %4 : vector<16x32xf32> to vector<16x32xbf16>
    %c0_4 = arith.constant 0 : index
    %c0_5 = arith.constant 0 : index
    %6 = vector.load %arg4[%c0_4, %c0_5] : memref<32x96xf32, #tpu.memory_space<vmem>>, vector<32x96xf32>
    %7 = arith.truncf %6 : vector<32x96xf32> to vector<32x96xbf16>
    %cst = arith.constant dense<0.000000e+00> : vector<16x96xf32>
    %8 = tpu.matmul %5, %7, %cst {dimension_numbers = #tpu.dot_dimension_numbers<[1], [0], [0], [1], [0, 0, 1, 1], [], []>} : vector<16x32xbf16>, vector<32x96xbf16>, vector<16x96xf32> -> vector<16x96xf32>
    %9 = arith.addf %3, %8 : vector<16x96xf32>
    %c0_6 = arith.constant 0 : index
    %c0_7 = arith.constant 0 : index
    %10 = vector.load %arg7[%c0_6, %c0_7] : memref<16x96xf32, #tpu.memory_space<vmem>>, vector<16x96xf32>
    tpu.vector_store %arg7[%c0_6, %c0_7], %9 {strides = array<i32>} : memref<16x96xf32, #tpu.memory_space<vmem>>, vector<16x96xf32>,
    %c0_i32_8 = arith.constant 0 : i32
    %11 = arith.cmpi eq, %arg2, %c0_i32_8 : i32
    %12 = arith.extui %11 : i1 to i32
    %c0_i32_9 = arith.constant 0 : i32
    %13 = arith.cmpi ne, %12, %c0_i32_9 : i32
    scf.if %13 {
      %c0_10 = arith.constant 0 : index
      %c0_11 = arith.constant 0 : index
      %14 = vector.load %arg7[%c0_10, %c0_11] : memref<16x96xf32, #tpu.memory_space<vmem>>, vector<16x96xf32>
      %c0_12 = arith.constant 0 : index
      %c0_13 = arith.constant 0 : index
      %15 = vector.load %arg5[%c0_12, %c0_13] : memref<1x96xf32, #tpu.memory_space<vmem>>, vector<1x96xf32>
      %16 = vector.broadcast %15 : vector<1x96xf32> to vector<16x96xf32>
      %17 = arith.addf %14, %16 : vector<16x96xf32>
      %c0_14 = arith.constant 0 : index
      %c0_15 = arith.constant 0 : index
      %18 = vector.load %arg6[%c0_14, %c0_15] : memref<16x96xf32, #tpu.memory_space<vmem>>, vector<16x96xf32>
      tpu.vector_store %arg6[%c0_14, %c0_15], %17 {strides = array<i32>} : memref<16x96xf32, #tpu.memory_space<vmem>>, vector<16x96xf32>,
    } else {
    }
    return
  }
  func.func @transform_0(%arg0: i32, %arg1: i32, %arg2: i32) -> (i32, i32) {
    %c0_i32 = arith.constant 0 : i32
    return %arg0, %arg2 : i32, i32
  }
  func.func @transform_1(%arg0: i32, %arg1: i32, %arg2: i32) -> (i32, i32) {
    %c0_i32 = arith.constant 0 : i32
    return %arg2, %arg1 : i32, i32
  }
  func.func @transform_2(%arg0: i32, %arg1: i32, %arg2: i32) -> (i32, i32) {
    %c0_i32 = arith.constant 0 : i32
    %c0_i32_0 = arith.constant 0 : i32
    return %c0_i32, %arg1 : i32, i32
  }
  func.func @transform_3(%arg0: i32, %arg1: i32, %arg2: i32) -> (i32, i32) {
    %c0_i32 = arith.constant 0 : i32
    return %arg0, %arg1 : i32, i32
  }
}

</mosaic_0001>

<llo_original>
// kernel: tpu_custom_call.1
$region0: #{tpu_custom_call.1}
  #allocation0 [shape = 'u32[]', space=smem, size = 0x4, offset = 0x4, fixed_abs, tag = 'smem constant byte address 0x4 - core index']
  #allocation1 [shape = 'u32[72,128]{1,0:T(1,128)}', space=vmem, size = 0x9000, scoped, tag = 'internal scratch']
  #allocation2 [shape = 'f32[16,96]{1,0:T(8,128)}', space=vmem, size = 0x2000, scoped, tag = 'scratch operand']
  %s0 = inlined_call_operand.hbm [shape: f32[16,32], index: 0, kind: input, shape index: {}]
  %s1 = inlined_call_operand.hbm [shape: f32[32,96], index: 1, kind: input, shape index: {}]
  %s2 = inlined_call_operand.vmem [shape: f32[1,96], index: 2, kind: input, shape index: {}]
  %s3 = inlined_call_operand.hbm [shape: f32[16,96], index: 3, kind: output, shape index: {}]
  %s4 = sld [smem:[#allocation0]]
  $region38: #{tpu_custom_call.1} parent=0
    _
  %s6 = ssub.s32 1, %s4
  %s7 = scalar_select 0, %s6, %s4
  $region1: #{tpu_custom_call.1} parent=0
    #allocation3 [shape = 'u8[8192]{0}', space=vmem, size = 0x2000, scoped, tag = 'input window, operand 0, single buffered']
    #allocation4 [shape = 's32[1]{0}', space=sflag, size = 0x4, scoped, tag = 'scoped memory for tpu_custom_call.1']
    #allocation5 [shape = 's32[1]{0}', space=sflag, size = 0x4, scoped, tag = 'scoped memory for tpu_custom_call.1']
    #allocation6 [shape = 'u8[16384]{0}', space=vmem, size = 0x4000, scoped, tag = 'input window, operand 1, single buffered']
    #allocation7 [shape = 's32[1]{0}', space=sflag, size = 0x4, scoped, tag = 'scoped memory for tpu_custom_call.1']
    #allocation8 [shape = 'u8[8192]{0}', space=vmem, size = 0x2000, scoped, tag = 'output window, operand 0, single buffered']
    %8 = vsyncpa [#allocation4], 0
    %9 = vsyncpa [#allocation7], 0
    %10 = vsyncpa [#allocation5], 0
    // Predicated region
    $region2: #{tpu_custom_call.1} parent=1 // pred_check
      _
    $region3: #{tpu_custom_call.1} parent=1 // pred_check_branch
      %12 = sbr.rel (0) target = $region5
    $region4: #{tpu_custom_call.1} parent=1 // pred_region
      %14 = vsyncadd [#allocation4], 0
      %s15 = sshll.u32 %s0, 4
      %s16 = int_to_ptr.hbm [resolvable:$true] %s15
      %s17 = sshll.u32 [#allocation3], 4
      %s18 = int_to_ptr.vmem [resolvable:$true] %s17
      %23 = dma.hbm_to_vmem [thread:$0]  %s16, 256, %s18, [#allocation4], 128, 128, 8
    $region5: #{tpu_custom_call.1} parent=1 // pred_fallthru
      _
    // Predicated region
    $region6: #{tpu_custom_call.1} parent=1 // pred_check
      _
    $region7: #{tpu_custom_call.1} parent=1 // pred_check_branch
      %25 = sbr.rel (0) target = $region9
    $region8: #{tpu_custom_call.1} parent=1 // pred_region
      %27 = vsyncadd [#allocation7], 0
      %s28 = sshll.u32 %s1, 4
      %s29 = int_to_ptr.hbm [resolvable:$true] %s28
      %s30 = sshll.u32 [#allocation6], 4
      %s31 = int_to_ptr.vmem [resolvable:$true] %s30
      %36 = dma.hbm_to_vmem [thread:$0]  %s29, 512, %s31, [#allocation7], 128, 128, 8
    $region9: #{tpu_custom_call.1} parent=1 // pred_fallthru
      _
    // Predicated region
    $region10: #{tpu_custom_call.1} parent=1 // pred_check
      _
    $region11: #{tpu_custom_call.1} parent=1 // pred_check_branch
      %38 = sbr.rel (0) target = $region13
    $region12: #{tpu_custom_call.1} parent=1 // pred_region
      _
    $region13: #{tpu_custom_call.1} parent=1 // pred_fallthru
      _
    // Predicated region
    $region14: #{tpu_custom_call.1} parent=1 // pred_check
      _
    $region15: #{tpu_custom_call.1} parent=1 // pred_check_branch
      %40 = sbr.rel (0) target = $region17
    $region16: #{tpu_custom_call.1} parent=1 // pred_region
      %42 = dma.done [#allocation4], 256
    $region17: #{tpu_custom_call.1} parent=1 // pred_fallthru
      _
    // Predicated region
    $region18: #{tpu_custom_call.1} parent=1 // pred_check
      _
    $region19: #{tpu_custom_call.1} parent=1 // pred_check_branch
      %44 = sbr.rel (0) target = $region21
    $region20: #{tpu_custom_call.1} parent=1 // pred_region
      %46 = dma.done [#allocation7], 512
    $region21: #{tpu_custom_call.1} parent=1 // pred_fallthru
      _
    %p48 = scmp.eq.s32.totalorder 0, 0
    // Predicated region
    $region22: #{tpu_custom_call.1} parent=1 // pred_check
      %p49 = pneg %p48
    $region23: #{tpu_custom_call.1} parent=1 // pred_check_branch
      %51 = sbr.rel (%p49) target = $region25
    $region24: #{tpu_custom_call.1} parent=1 // pred_region
      %vm52 = vcmask 785408
      %53 = vst.msk [vmem:[#allocation2] sm:$0xff] %vm52, 0.0
      %54 = vst.msk [vmem:[#allocation2 + $0x8] sm:$0xff] %vm52, 0.0
    $region25: #{tpu_custom_call.1} parent=1 // pred_fallthru
      _
    %v55 = vld [vmem:[#allocation2] sm:$0xff]
    %v56 = vld [vmem:[#allocation2 + $0x8] sm:$0xff]
    %v57 = vld [vmem:[#allocation3] sm:$0xff]
    %v58 = vld [vmem:[#allocation3 + $0x8] sm:$0xff]
    %v59 = vpack.c.bf16 %v58, %v57
    %v60 = vld [vmem:[#allocation6] sm:$0xff]
    %v61 = vld [vmem:[#allocation6 + $0x8] sm:$0xff]
    %v62 = vld [vmem:[#allocation6 + $0x10] sm:$0xff]
    %v63 = vld [vmem:[#allocation6 + $0x18] sm:$0xff]
    %v64 = vpack.c.bf16 %v61, %v60
    %v65 = vpack.c.bf16 %v63, %v62
    %vm66 = vcmask 261120
    %v68 = vsel %vm66, %v59, 0
    %70 = vmatpush.bf16.msra.mxu0 0
    %71 = vmatpush.bf16.msra.mxu0 0
    %72 = vmatpush.bf16.msra.mxu0 0
    %73 = vmatpush.bf16.msra.mxu0 0
    %74 = vmatpush.bf16.msra.mxu0 0
    %75 = vmatpush.bf16.msra.mxu0 0
    %76 = vmatpush.bf16.msra.mxu0 %v65
    %77 = vmatpush.bf16.msra.mxu0 %v64
    %78 = vmatmul.bf16.gmra.mxu0 %v68
    %v79 = vpop.f32.mrf.mxu0
    %v80 = vadd.f32 0.0, %v79
    %v81 = vpop.f32.mrf.mxu0
    %v82 = vadd.f32 0.0, %v81
    %83 = vdwg.mxu0
    %v84 = vadd.f32 %v55, %v80
    %v85 = vadd.f32 %v56, %v82
    %vm86 = vcmask 785408
    %87 = vst.msk [vmem:[#allocation2] sm:$0xff] %vm86, %v84
    %88 = vst.msk [vmem:[#allocation2 + $0x8] sm:$0xff] %vm86, %v85
    // Predicated region
    $region26: #{tpu_custom_call.1} parent=1 // pred_check
      %p89 = pneg %p48
    $region27: #{tpu_custom_call.1} parent=1 // pred_check_branch
      %91 = sbr.rel (%p89) target = $region29
    $region28: #{tpu_custom_call.1} parent=1 // pred_region
      %v92 = vld [vmem:[#allocation2] sm:$0xff]
      %v93 = vld [vmem:[#allocation2 + $0x8] sm:$0xff]
      %v94 = vld [vmem:[%s2] sm:$0x1]
      %v96 = vperm.slane %v94, 0
      %v98 = vadd.f32 %v92, %v96
      %v99 = vadd.f32 %v93, %v96
      %100 = vst.msk [vmem:[#allocation8] sm:$0xff] %vm86, %v98
      %101 = vst.msk [vmem:[#allocation8 + $0x8] sm:$0xff] %vm86, %v99
    $region29: #{tpu_custom_call.1} parent=1 // pred_fallthru
      _
    // Predicated region
    $region30: #{tpu_custom_call.1} parent=1 // pred_check
      _
    $region31: #{tpu_custom_call.1} parent=1 // pred_check_branch
      %103 = sbr.rel (0) target = $region33
    $region32: #{tpu_custom_call.1} parent=1 // pred_region
      %105 = vsyncadd [#allocation5], 0
      %s106 = sshll.u32 [#allocation8], 4
      %s107 = int_to_ptr.vmem [resolvable:$true] %s106
      %s108 = sshll.u32 %s3, 4
      %s109 = int_to_ptr.hbm [resolvable:$true] %s108
      %114 = dma.vmem_to_hbm [thread:$0]  %s107, 256, %s109, [#allocation5], 128, 128, 8
    $region33: #{tpu_custom_call.1} parent=1 // pred_fallthru
      _
    // Predicated region
    $region34: #{tpu_custom_call.1} parent=1 // pred_check
      _
    $region35: #{tpu_custom_call.1} parent=1 // pred_check_branch
      %116 = sbr.rel (0) target = $region37
    $region36: #{tpu_custom_call.1} parent=1 // pred_region
      %118 = dma.done [#allocation5], 256
    $region37: #{tpu_custom_call.1} parent=1 // pred_fallthru
      _
    %119 = vsyncpa [#allocation4], 1
    %120 = vsyncpa [#allocation7], 1
    %121 = vsyncpa [#allocation5], 1

</llo_original>
